<compile_context>
chip_gen: v6e
topology: v6e:2x2x1
jax: 0.10.0
libtpu: 0.0.40
codegen_flags: <defaults>
</compile_context>

<pallas_src>
import math
from functools import partial

import jax
import jax.numpy as jnp
from jax import lax
from jax.experimental import pallas as pl
from jax.experimental.pallas import tpu as pltpu


_VMEM_LIMIT_BYTES = 48 * 1024 * 1024   # headroom; << physical VMEM on v5e/v6e/v7x


def _target_block_bytes():
    """~3 MiB blocks on v6e/v7x (per review), conservative 2 MiB otherwise (v5e)."""
    kind = ""
    try:
        kind = jax.devices()[0].device_kind.lower()
    except Exception:
        pass
    if any(tag in kind for tag in ("v6", "v7", "tpu7")):
        return 3 * 1024 * 1024
    return 2 * 1024 * 1024


def _sublane_align(dtype):
    """Native sublane tile: 8 for 32-bit, 16 for 16-bit, 32 for 8-bit dtypes."""
    bits = jnp.dtype(dtype).itemsize * 8
    if bits >= 32:
        return 8
    if bits == 16:
        return 16
    return 32


# --------------------------------------------------------------------------
# Kernels
# --------------------------------------------------------------------------

def _make_lane_kernel(stride):
    """Pairs along lanes: partner of lane l is l +/- stride; group = l // stride."""

    def kernel(x_ref, o_ref):
        x = x_ref[...]
        w = x.shape[1]
        # Single XLU rotates (no concat-of-slices temporaries):
        nxt = pltpu.roll(x, shift=w - stride, axis=1)   # nxt[l] = x[l + stride]
        prv = pltpu.roll(x, shift=stride, axis=1)       # prv[l] = x[l - stride]
        lane = lax.broadcasted_iota(jnp.int32, (1, w), 1)
        grp = lane if stride == 1 else lane // stride
        is_even = (grp & 1) == 0
        # even group -> max with its partner, odd group -> min with it.
        o_ref[...] = jnp.where(is_even, jnp.maximum(x, nxt), jnp.minimum(x, prv))

    return kernel


def _sublane_kernel(x_ref, o_ref):
    """Pairs along adjacent rows (sublanes) of a 2-D block."""
    x = x_ref[...]
    r = x.shape[0]
    nxt = pltpu.roll(x, shift=r - 1, axis=0)
    prv = pltpu.roll(x, shift=1, axis=0)
    i = lax.broadcasted_iota(jnp.int32, (r, 1), 0)
    is_even = (i & 1) == 0
    o_ref[...] = jnp.where(is_even, jnp.maximum(x, nxt), jnp.minimum(x, prv))


# --------------------------------------------------------------------------
# Tiling helpers
# --------------------------------------------------------------------------

def _pick_width(total, unit, cap, itemsize, align):
    """Largest width that is a multiple of `unit`, divides `total`, fits `cap`;
    prefer multiples of 128 (unmasked stores) and enough rows for pipelining."""
    n_units = total // unit
    want_rows = 4 * align if total * itemsize >= (1 << 20) else 1
    best_key, best_w = None, unit
    i = 1
    while i * i <= n_units:
        if n_units % i == 0:
            for k in (i, n_units // i):
                w = unit * k
                rows = total // w
                key = (w <= cap,            # fits the per-block byte budget
                       w % 128 == 0,        # lane-dense (unmasked vst)
                       rows >= want_rows,   # enough grid depth to pipeline
                       w >= 128,
                       w if w <= cap else -w)
                if best_key is None or key > best_key:
                    best_key, best_w = key, w
        i += 1
    return best_w


def _pick_row_tile(rows, row_bytes, align, block_bytes):
    if rows <= align:
        return rows
    t = min(rows, max(align, block_bytes // max(row_bytes, 1)))
    t = max(align, (t // align) * align)
    # Keep >= 4 pipelined grid steps (>= 2 per TensorCore on megacore parts)
    # whenever there is at least ~1 MiB of work to split.
    if rows * row_bytes >= (1 << 20) and rows // 4 >= align:
        t = min(t, max(align, (rows // 4) // align * align))
    return t


# --------------------------------------------------------------------------
# pallas_call wrappers
# --------------------------------------------------------------------------

def _run_lane_2d(x2, stride, block_bytes, align):
    rows, width = x2.shape
    itemsize = x2.dtype.itemsize
    t_rows = _pick_row_tile(rows, width * itemsize, align, block_bytes)
    grid = (pl.cdiv(rows, t_rows),)
    return pl.pallas_call(
        _make_lane_kernel(stride),
        out_shape=jax.ShapeDtypeStruct((rows, width), x2.dtype),
        grid=grid,
        in_specs=[pl.BlockSpec((t_rows, width), lambda i: (i, 0))],
        out_specs=pl.BlockSpec((t_rows, width), lambda i: (i, 0)),
        compiler_params=pltpu.CompilerParams(
            dimension_semantics=("parallel",),
            vmem_limit_bytes=_VMEM_LIMIT_BYTES),
        cost_estimate=pl.CostEstimate(
            flops=3 * x2.size, transcendentals=0,
            bytes_accessed=2 * x2.size * itemsize),
    )(x2)


def _run_sublane_2d(x2, block_bytes, align):
    rows, cols = x2.shape
    itemsize = x2.dtype.itemsize
    t_cols = max(128, (block_bytes // (itemsize * align)) // 128 * 128)
    if t_cols >= cols:
        t_cols = cols
    t_rows = max(align, (block_bytes // (t_cols * itemsize)) // align * align)
    if t_rows >= rows:
        t_rows = rows
    # Pair-safety: even extent + even offsets along the (row) pair axis.
    assert rows % 2 == 0 and t_rows % 2 == 0
    grid = (pl.cdiv(rows, t_rows), pl.cdiv(cols, t_cols))
    return pl.pallas_call(
        _sublane_kernel,
        out_shape=jax.ShapeDtypeStruct((rows, cols), x2.dtype),
        grid=grid,
        in_specs=[pl.BlockSpec((t_rows, t_cols), lambda i, j: (i, j))],
        out_specs=pl.BlockSpec((t_rows, t_cols), lambda i, j: (i, j)),
        compiler_params=pltpu.CompilerParams(
            dimension_semantics=("parallel", "parallel"),
            vmem_limit_bytes=_VMEM_LIMIT_BYTES),
        cost_estimate=pl.CostEstimate(
            flops=3 * x2.size, transcendentals=0,
            bytes_accessed=2 * x2.size * itemsize),
    )(x2)


# --------------------------------------------------------------------------
# Public op
# --------------------------------------------------------------------------

def _maxmin_forward(x, axis):
    axis = axis % x.ndim
    n = x.shape[axis]
    if n % 2 != 0:
        raise ValueError("MaxMin axis length must be even")
    if x.size == 0:
        return x

    itemsize = jnp.dtype(x.dtype).itemsize
    align = _sublane_align(x.dtype)
    block_bytes = _target_block_bytes()
    after = math.prod(x.shape[axis + 1:])
    stride = max(after, 1)
    unit = 2 * stride                       # flat period of one max/min pair group
    total = x.size
    cap = block_bytes // (itemsize * align)  # max lane width per block

    if unit <= cap:
        # Lane-pair path: flat lane-dense view; partner is a lane roll of +/-stride.
        width = _pick_width(total, unit, cap, itemsize, align)
        if width >= 128 or width == total:
            out = _run_lane_2d(x.reshape(total // width, width), stride,
                               block_bytes, align)
            return out.reshape(x.shape)
        # No acceptable divisor: pad the flat tail (even number of zeros) to a
        # comfortable lane width, compute, slice back.
        k = max(1, min(cap // unit, -(-1024 // unit)))
        w_pad = unit * k
        pad = (-total) % w_pad
        flat = jnp.pad(x.reshape(total), (0, pad))
        out = _run_lane_2d(flat.reshape(-1, w_pad), stride, block_bytes, align)
        return out.reshape(-1)[:total].reshape(x.shape)

    # Huge trailing size: pair along adjacent rows of a (before*n, after) view
    # (lane-dense since `after` is large); tile columns in 128-multiples.
    before = math.prod(x.shape[:axis])
    out = _run_sublane_2d(x.reshape(before * n, after), block_bytes, align)
    return out.reshape(x.shape)


@partial(jax.custom_vjp, nondiff_argnums=(1,))
def maxmin(x, axis=-1):
    return _maxmin_forward(x, axis)


def _maxmin_fwd(x, axis):
    return _maxmin_forward(x, axis), x


def _maxmin_bwd(axis, x, g):
    # TODO(synk): backward is pure JAX (roll+select on the cotangent), not a
    # Pallas kernel; it matches the CUDA extension's gradient routing.
    axis = axis % x.ndim
    xt = jnp.moveaxis(x, axis, -1)
    gt = jnp.moveaxis(g, axis, -1)
    s = xt.shape
    xp = xt.reshape(*s[:-1], s[-1] // 2, 2)
    gp = gt.reshape(*s[:-1], s[-1] // 2, 2)
    a, b = xp[..., 0], xp[..., 1]
    g_max, g_min = gp[..., 0], gp[..., 1]
    cond = a >= b
    ga = jnp.where(cond, g_max, g_min)
    gb = jnp.where(cond, g_min, g_max)
    gx = jnp.stack([ga, gb], axis=-1).reshape(s)
    return (jnp.moveaxis(gx, -1, axis),)


maxmin.defvjp(_maxmin_fwd, _maxmin_bwd)


class MaxMin:
    """Mirror of the PyTorch MaxMin module (no parameters)."""

    def __init__(self, axis=-1):
        self.axis = axis

    def __call__(self, x):
        return maxmin(x, self.axis)


def _maxmin_ref(x, axis=-1):
    """Pure-JAX reference of the same semantics."""
    axis = axis % x.ndim
    xt = jnp.moveaxis(x, axis, -1)
    s = xt.shape
    xp = xt.reshape(*s[:-1], s[-1] // 2, 2)
    out = jnp.stack([xp.max(-1), xp.min(-1)], axis=-1).reshape(s)
    return jnp.moveaxis(out, -1, axis)


if __name__ == "__main__":
    key = jax.random.PRNGKey(0)
    x = jax.random.normal(key, (2, 4, 16, 16), dtype=jnp.float32)  # NCHW-like

    # Default axis (=-1, W dimension).
    y = jax.block_until_ready(MaxMin(axis=-1)(x))
    assert y.shape == x.shape and y.dtype == x.dtype
    assert jnp.allclose(y, _maxmin_ref(x, -1))

    # Channel axis (=1): lane-roll-by-`after` path, no transposes.
    yc = jax.block_until_ready(MaxMin(axis=1)(x))
    assert jnp.allclose(yc, _maxmin_ref(x, 1))

    # CNN-ish shape whose trailing size (7*7=49) is not a multiple of 128.
    xo = jax.random.normal(jax.random.PRNGKey(1), (8, 16, 7, 7), jnp.float32)
    assert jnp.allclose(MaxMin(axis=1)(xo), _maxmin_ref(xo, 1))

    # Awkward small innermost length.
    xa = jax.random.normal(jax.random.PRNGKey(2), (2, 3, 14), jnp.float32)
    assert jnp.allclose(MaxMin(axis=-1)(xa), _maxmin_ref(xa, -1))

    # Size with a poor factorization -> internal even zero-padding path.
    xp_ = jax.random.normal(jax.random.PRNGKey(6), (200006,), jnp.float32)
    assert jnp.allclose(MaxMin(axis=0)(xp_), _maxmin_ref(xp_, 0))

    # bf16 exercises the 16-sublane alignment rule on both axes.
    xb = jax.random.normal(jax.random.PRNGKey(3), (4, 8, 32, 128), jnp.bfloat16)
    assert jnp.allclose(MaxMin(axis=-1)(xb), _maxmin_ref(xb, -1))
    assert jnp.allclose(MaxMin(axis=1)(xb), _maxmin_ref(xb, 1))

    # Very large trailing size -> sublane-pair fallback path.
    xl = jax.random.normal(jax.random.PRNGKey(4), (4, 65536), jnp.float32)
    assert jnp.allclose(MaxMin(axis=0)(xl), _maxmin_ref(xl, 0))

    # Gradient through the custom VJP matches autodiff of the reference.
    w = jax.random.normal(jax.random.PRNGKey(5), x.shape, jnp.float32)
    g_k = jax.grad(lambda t: jnp.sum(maxmin(t, -1) * w))(x)
    g_r = jax.grad(lambda t: jnp.sum(_maxmin_ref(t, -1) * w))(x)
    assert jnp.allclose(g_k, g_r, atol=1e-6)

    jax.block_until_ready(g_k)
    print("KERNEL_OK")
</pallas_src>

<mosaic_0001>
module attributes {stable_mosaic.version = 11 : i64} {
  func.func @kernel(%arg0: i32, %arg1: memref<1x2048xf32, #tpu.memory_space<vmem>>, %arg2: memref<1x2048xf32, #tpu.memory_space<vmem>>) attributes {dimension_semantics = [#tpu.dimension_semantics<parallel>], iteration_bounds = array<i64: 1>, scalar_prefetch = 0 : i64, scratch_operands = 0 : i64, tpu.core_type = #tpu.core_type<tc>, window_params = [{transform_indices = @transform_0, window_bounds = array<i64: 1, 2048>}, {transform_indices = @transform_1, window_bounds = array<i64: 1, 2048>}]} {
    %c0 = arith.constant 0 : index
    %c0_0 = arith.constant 0 : index
    %0 = vector.load %arg1[%c0, %c0_0] : memref<1x2048xf32, #tpu.memory_space<vmem>>, vector<1x2048xf32>
    %c2047_i32 = arith.constant 2047 : i32
    %1 = tpu.dynamic_rotate %0 by %c2047_i32 dim 1 : vector<1x2048xf32>, i32 -> vector<1x2048xf32>
    %c1_i32 = arith.constant 1 : i32
    %2 = tpu.dynamic_rotate %0 by %c1_i32 dim 1 : vector<1x2048xf32>, i32 -> vector<1x2048xf32>
    %3 = tpu.iota {dimensions = array<i32: 1>} : vector<1x2048xi32>
    %c1_i32_1 = arith.constant 1 : i32
    %4 = vector.broadcast %c1_i32_1 : i32 to vector<1x2048xi32>
    %5 = arith.andi %3, %4 : vector<1x2048xi32>
    %c0_i32 = arith.constant 0 : i32
    %6 = vector.broadcast %c0_i32 : i32 to vector<1x2048xi32>
    %7 = arith.cmpi eq, %5, %6 : vector<1x2048xi32>
    %8 = arith.maximumf %0, %1 : vector<1x2048xf32>
    %9 = arith.minimumf %0, %2 : vector<1x2048xf32>
    %10 = arith.select %7, %8, %9 : vector<1x2048xi1>, vector<1x2048xf32>
    %c0_2 = arith.constant 0 : index
    %c0_3 = arith.constant 0 : index
    %11 = vector.load %arg2[%c0_2, %c0_3] : memref<1x2048xf32, #tpu.memory_space<vmem>>, vector<1x2048xf32>
    tpu.vector_store %arg2[%c0_2, %c0_3], %10 {strides = array<i32>} : memref<1x2048xf32, #tpu.memory_space<vmem>>, vector<1x2048xf32>,
    return
  }
  func.func @transform_0(%arg0: i32) -> (i32, i32) {
    %c0_i32 = arith.constant 0 : i32
    %c0_i32_0 = arith.constant 0 : i32
    return %arg0, %c0_i32 : i32, i32
  }
  func.func @transform_1(%arg0: i32) -> (i32, i32) {
    %c0_i32 = arith.constant 0 : i32
    %c0_i32_0 = arith.constant 0 : i32
    return %arg0, %c0_i32 : i32, i32
  }
}

</mosaic_0001>

<llo_original>
// kernel: tpu_custom_call.1
$region0: #{tpu_custom_call.1}
  #allocation0 [shape = 'u32[]', space=smem, size = 0x4, offset = 0x4, fixed_abs, tag = 'smem constant byte address 0x4 - core index']
  #allocation1 [shape = 'u32[144,128]{1,0:T(1,128)}', space=vmem, size = 0x12000, scoped, tag = 'internal scratch']
  %s0 = inlined_call_operand.hbm [shape: f32[1,2048], index: 0, kind: input, shape index: {}]
  %s1 = inlined_call_operand.hbm [shape: f32[1,2048], index: 1, kind: output, shape index: {}]
  %s2 = sld [smem:[#allocation0]]
  $region18: #{tpu_custom_call.1} parent=0
    _
  %s4 = ssub.s32 1, %s2
  %s5 = scalar_select 0, %s4, %s2
  $region1: #{tpu_custom_call.1} parent=0
    #allocation2 [shape = 'u8[8192]{0}', space=vmem, size = 0x2000, scoped, tag = 'input window, operand 0, single buffered']
    #allocation3 [shape = 's32[1]{0}', space=sflag, size = 0x4, scoped, tag = 'scoped memory for tpu_custom_call.1']
    #allocation4 [shape = 's32[1]{0}', space=sflag, size = 0x4, scoped, tag = 'scoped memory for tpu_custom_call.1']
    #allocation5 [shape = 'u8[8192]{0}', space=vmem, size = 0x2000, scoped, tag = 'output window, operand 0, single buffered']
    %6 = vsyncpa [#allocation3], 0
    %7 = vsyncpa [#allocation4], 0
    // Predicated region
    $region2: #{tpu_custom_call.1} parent=1 // pred_check
      _
    $region3: #{tpu_custom_call.1} parent=1 // pred_check_branch
      %9 = sbr.rel (0) target = $region5
    $region4: #{tpu_custom_call.1} parent=1 // pred_region
      %s11 = ssub.s32 256, 256
      %12 = vsyncadd [#allocation3], %s11
      %s14 = sshll.u32 [#allocation2], 4
      %s15 = int_to_ptr.vmem [resolvable:$true] %s14
      %17 = dma.hbm_to_vmem [thread:$0]  %s0, 256, %s15, [#allocation3]
    $region5: #{tpu_custom_call.1} parent=1 // pred_fallthru
      _
    // Predicated region
    $region6: #{tpu_custom_call.1} parent=1 // pred_check
      _
    $region7: #{tpu_custom_call.1} parent=1 // pred_check_branch
      %19 = sbr.rel (0) target = $region9
    $region8: #{tpu_custom_call.1} parent=1 // pred_region
      %20 = dma.done [#allocation3], 256
    $region9: #{tpu_custom_call.1} parent=1 // pred_fallthru
      _
    %v21 = vld [vmem:[#allocation2] sm:$0xff]
    %v22 = vld [vmem:[#allocation2 + $0x8] sm:$0xff]
    %v25 = vlaneseq
    %v26 = vshrl.u32 %v25, 7
    %v27 = vsub.s32 0, %v26
    %v28 = vrot.slane %v21, %v27
    %v29 = vlaneseq
    %v30 = vshrl.u32 %v29, 7
    %v31 = vsub.s32 1, %v30
    %v32 = vrot.slane %v21, %v31
    %v33 = vlaneseq
    %v34 = vshrl.u32 %v33, 7
    %v35 = vsub.s32 2, %v34
    %v36 = vrot.slane %v21, %v35
    %v37 = vlaneseq
    %v38 = vshrl.u32 %v37, 7
    %v39 = vsub.s32 3, %v38
    %v40 = vrot.slane %v21, %v39
    %v41 = vlaneseq
    %v42 = vshrl.u32 %v41, 7
    %v43 = vsub.s32 4, %v42
    %v44 = vrot.slane %v21, %v43
    %v45 = vlaneseq
    %v46 = vshrl.u32 %v45, 7
    %v47 = vsub.s32 5, %v46
    %v48 = vrot.slane %v21, %v47
    %v49 = vlaneseq
    %v50 = vshrl.u32 %v49, 7
    %v51 = vsub.s32 6, %v50
    %v52 = vrot.slane %v21, %v51
    %v53 = vlaneseq
    %v54 = vshrl.u32 %v53, 7
    %v55 = vsub.s32 7, %v54
    %v56 = vrot.slane %v21, %v55
    %v57 = vlaneseq
    %v58 = vshrl.u32 %v57, 7
    %v59 = vsub.s32 0, %v58
    %v60 = vrot.slane %v22, %v59
    %v61 = vlaneseq
    %v62 = vshrl.u32 %v61, 7
    %v63 = vsub.s32 1, %v62
    %v64 = vrot.slane %v22, %v63
    %v65 = vlaneseq
    %v66 = vshrl.u32 %v65, 7
    %v67 = vsub.s32 2, %v66
    %v68 = vrot.slane %v22, %v67
    %v69 = vlaneseq
    %v70 = vshrl.u32 %v69, 7
    %v71 = vsub.s32 3, %v70
    %v72 = vrot.slane %v22, %v71
    %v73 = vlaneseq
    %v74 = vshrl.u32 %v73, 7
    %v75 = vsub.s32 4, %v74
    %v76 = vrot.slane %v22, %v75
    %v77 = vlaneseq
    %v78 = vshrl.u32 %v77, 7
    %v79 = vsub.s32 5, %v78
    %v80 = vrot.slane %v22, %v79
    %v81 = vlaneseq
    %v82 = vshrl.u32 %v81, 7
    %v83 = vsub.s32 6, %v82
    %v84 = vrot.slane %v22, %v83
    %v85 = vlaneseq
    %v86 = vshrl.u32 %v85, 7
    %v87 = vsub.s32 7, %v86
    %v88 = vrot.slane %v22, %v87
    %105 = vrot.lane.b32.xlu0 %v28, 127
    %v106 = vpop.permute.xlu0 %105
    %107 = vrot.lane.b32.xlu0 %v32, 127
    %v108 = vpop.permute.xlu0 %107
    %109 = vrot.lane.b32.xlu0 %v36, 127
    %v110 = vpop.permute.xlu0 %109
    %111 = vrot.lane.b32.xlu0 %v40, 127
    %v112 = vpop.permute.xlu0 %111
    %113 = vrot.lane.b32.xlu0 %v44, 127
    %v114 = vpop.permute.xlu0 %113
    %115 = vrot.lane.b32.xlu0 %v48, 127
    %v116 = vpop.permute.xlu0 %115
    %117 = vrot.lane.b32.xlu0 %v52, 127
    %v118 = vpop.permute.xlu0 %117
    %119 = vrot.lane.b32.xlu0 %v56, 127
    %v120 = vpop.permute.xlu0 %119
    %121 = vrot.lane.b32.xlu0 %v60, 127
    %v122 = vpop.permute.xlu0 %121
    %123 = vrot.lane.b32.xlu0 %v64, 127
    %v124 = vpop.permute.xlu0 %123
    %125 = vrot.lane.b32.xlu0 %v68, 127
    %v126 = vpop.permute.xlu0 %125
    %127 = vrot.lane.b32.xlu0 %v72, 127
    %v128 = vpop.permute.xlu0 %127
    %129 = vrot.lane.b32.xlu0 %v76, 127
    %v130 = vpop.permute.xlu0 %129
    %131 = vrot.lane.b32.xlu0 %v80, 127
    %v132 = vpop.permute.xlu0 %131
    %133 = vrot.lane.b32.xlu0 %v84, 127
    %v134 = vpop.permute.xlu0 %133
    %135 = vrot.lane.b32.xlu0 %v88, 127
    %v136 = vpop.permute.xlu0 %135
    %v137 = vlaneseq
    %v138 = vand.u32 %v137, 127
    %vm139 = vcmp.lt.s32.totalorder %v138, 127
    %v140 = vsel %vm139, %v134, %v136
    %v141 = vsel %vm139, %v132, %v134
    %v142 = vsel %vm139, %v130, %v132
    %v143 = vsel %vm139, %v128, %v130
    %v144 = vsel %vm139, %v126, %v128
    %v145 = vsel %vm139, %v124, %v126
    %v146 = vsel %vm139, %v122, %v124
    %v147 = vsel %vm139, %v120, %v122
    %v148 = vsel %vm139, %v118, %v120
    %v149 = vsel %vm139, %v116, %v118
    %v150 = vsel %vm139, %v114, %v116
    %v151 = vsel %vm139, %v112, %v114
    %v152 = vsel %vm139, %v110, %v112
    %v153 = vsel %vm139, %v108, %v110
    %v154 = vsel %vm139, %v106, %v108
    %v155 = vsel %vm139, %v136, %v106
    %156 = vrot.lane.b32.xlu0 %v28, 1
    %v157 = vpop.permute.xlu0 %156
    %158 = vrot.lane.b32.xlu0 %v32, 1
    %v159 = vpop.permute.xlu0 %158
    %160 = vrot.lane.b32.xlu0 %v36, 1
    %v161 = vpop.permute.xlu0 %160
    %162 = vrot.lane.b32.xlu0 %v40, 1
    %v163 = vpop.permute.xlu0 %162
    %164 = vrot.lane.b32.xlu0 %v44, 1
    %v165 = vpop.permute.xlu0 %164
    %166 = vrot.lane.b32.xlu0 %v48, 1
    %v167 = vpop.permute.xlu0 %166
    %168 = vrot.lane.b32.xlu0 %v52, 1
    %v169 = vpop.permute.xlu0 %168
    %170 = vrot.lane.b32.xlu0 %v56, 1
    %v171 = vpop.permute.xlu0 %170
    %172 = vrot.lane.b32.xlu0 %v60, 1
    %v173 = vpop.permute.xlu0 %172
    %174 = vrot.lane.b32.xlu0 %v64, 1
    %v175 = vpop.permute.xlu0 %174
    %176 = vrot.lane.b32.xlu0 %v68, 1
    %v177 = vpop.permute.xlu0 %176
    %178 = vrot.lane.b32.xlu0 %v72, 1
    %v179 = vpop.permute.xlu0 %178
    %180 = vrot.lane.b32.xlu0 %v76, 1
    %v181 = vpop.permute.xlu0 %180
    %182 = vrot.lane.b32.xlu0 %v80, 1
    %v183 = vpop.permute.xlu0 %182
    %184 = vrot.lane.b32.xlu0 %v84, 1
    %v185 = vpop.permute.xlu0 %184
    %186 = vrot.lane.b32.xlu0 %v88, 1
    %v187 = vpop.permute.xlu0 %186
    %vm188 = vcmp.lt.s32.totalorder %v138, 1
    %v189 = vsel %vm188, %v185, %v187
    %v190 = vsel %vm188, %v183, %v185
    %v191 = vsel %vm188, %v181, %v183
    %v192 = vsel %vm188, %v179, %v181
    %v193 = vsel %vm188, %v177, %v179
    %v194 = vsel %vm188, %v175, %v177
    %v195 = vsel %vm188, %v173, %v175
    %v196 = vsel %vm188, %v171, %v173
    %v197 = vsel %vm188, %v169, %v171
    %v198 = vsel %vm188, %v167, %v169
    %v199 = vsel %vm188, %v165, %v167
    %v200 = vsel %vm188, %v163, %v165
    %v201 = vsel %vm188, %v161, %v163
    %v202 = vsel %vm188, %v159, %v161
    %v203 = vsel %vm188, %v157, %v159
    %v204 = vsel %vm188, %v187, %v157
    %v205 = vadd.s32 %v138, 128
    %v206 = vadd.s32 %v138, 256
    %v207 = vadd.s32 %v138, 384
    %v208 = vadd.s32 %v138, 512
    %v209 = vadd.s32 %v138, 640
    %v210 = vadd.s32 %v138, 768
    %v211 = vadd.s32 %v138, 896
    %v212 = vadd.s32 %v138, 1024
    %v213 = vadd.s32 %v138, 1152
    %v214 = vadd.s32 %v138, 1280
    %v215 = vadd.s32 %v138, 1408
    %v216 = vadd.s32 %v138, 1536
    %v217 = vadd.s32 %v138, 1664
    %v218 = vadd.s32 %v138, 1792
    %v219 = vadd.s32 %v138, 1920
    %v220 = vand.u32 %v138, 1
    %v221 = vand.u32 %v205, 1
    %v222 = vand.u32 %v206, 1
    %v223 = vand.u32 %v207, 1
    %v224 = vand.u32 %v208, 1
    %v225 = vand.u32 %v209, 1
    %v226 = vand.u32 %v210, 1
    %v227 = vand.u32 %v211, 1
    %v228 = vand.u32 %v212, 1
    %v229 = vand.u32 %v213, 1
    %v230 = vand.u32 %v214, 1
    %v231 = vand.u32 %v215, 1
    %v232 = vand.u32 %v216, 1
    %v233 = vand.u32 %v217, 1
    %v234 = vand.u32 %v218, 1
    %v235 = vand.u32 %v219, 1
    %vm236 = vcmp.eq.s32.totalorder %v220, 0
    %vm237 = vcmp.eq.s32.totalorder %v221, 0
    %vm238 = vcmp.eq.s32.totalorder %v222, 0
    %vm239 = vcmp.eq.s32.totalorder %v223, 0
    %vm240 = vcmp.eq.s32.totalorder %v224, 0
    %vm241 = vcmp.eq.s32.totalorder %v225, 0
    %vm242 = vcmp.eq.s32.totalorder %v226, 0
    %vm243 = vcmp.eq.s32.totalorder %v227, 0
    %vm244 = vcmp.eq.s32.totalorder %v228, 0
    %vm245 = vcmp.eq.s32.totalorder %v229, 0
    %vm246 = vcmp.eq.s32.totalorder %v230, 0
    %vm247 = vcmp.eq.s32.totalorder %v231, 0
    %vm248 = vcmp.eq.s32.totalorder %v232, 0
    %vm249 = vcmp.eq.s32.totalorder %v233, 0
    %vm250 = vcmp.eq.s32.totalorder %v234, 0
    %vm251 = vcmp.eq.s32.totalorder %v235, 0
    %v268 = vcombine.low %v154, %v153
    %v269 = vcombine.low %v152, %v151
    %v270 = vcombine.low %v150, %v149
    %v271 = vcombine.low %v148, %v147
    %v273 = vunpack.c.l.s4 1966171168
    %v274 = vunpack.c.0.s8 %v273
    %v275 = vlaneseq
    %v276 = vshrl.u32 %v275, 7
    %v277 = vsub.s32 %v274, %v276
    %v278 = vrot.slane %v268, %v277
    %v280 = vunpack.c.l.s4 1966171168
    %v281 = vunpack.c.0.s8 %v280
    %v282 = vlaneseq
    %v283 = vshrl.u32 %v282, 7
    %v284 = vsub.s32 %v281, %v283
    %v285 = vrot.slane %v269, %v284
    %v287 = vunpack.c.l.s4 1966171168
    %v288 = vunpack.c.0.s8 %v287
    %v289 = vlaneseq
    %v290 = vshrl.u32 %v289, 7
    %v291 = vsub.s32 %v288, %v290
    %v292 = vrot.slane %v270, %v291
    %v294 = vunpack.c.l.s4 1966171168
    %v295 = vunpack.c.0.s8 %v294
    %v296 = vlaneseq
    %v297 = vshrl.u32 %v296, 7
    %v298 = vsub.s32 %v295, %v297
    %v299 = vrot.slane %v271, %v298
    %v300 = vcombine.low %v278, %v285
    %v301 = vcombine.low %v292, %v299
    %v303 = vunpack.c.l.s4 1966171168
    %v304 = vunpack.c.0.s8 %v303
    %v305 = vlaneseq
    %v306 = vshrl.u32 %v305, 7
    %v307 = vsub.s32 %v304, %v306
    %v308 = vrot.slane %v300, %v307
    %v310 = vunpack.c.l.s4 1966171168
    %v311 = vunpack.c.0.s8 %v310
    %v312 = vlaneseq
    %v313 = vshrl.u32 %v312, 7
    %v314 = vsub.s32 %v311, %v313
    %v315 = vrot.slane %v301, %v314
    %v316 = vcombine.low %v308, %v315
    %v317 = vcombine.low %v146, %v145
    %v318 = vcombine.low %v144, %v143
    %v319 = vcombine.low %v142, %v141
    %v320 = vcombine.low %v140, %v155
    %v322 = vunpack.c.l.s4 1966171168
    %v323 = vunpack.c.0.s8 %v322
    %v324 = vlaneseq
    %v325 = vshrl.u32 %v324, 7
    %v326 = vsub.s32 %v323, %v325
    %v327 = vrot.slane %v317, %v326
    %v329 = vunpack.c.l.s4 1966171168
    %v330 = vunpack.c.0.s8 %v329
    %v331 = vlaneseq
    %v332 = vshrl.u32 %v331, 7
    %v333 = vsub.s32 %v330, %v332
    %v334 = vrot.slane %v318, %v333
    %v336 = vunpack.c.l.s4 1966171168
    %v337 = vunpack.c.0.s8 %v336
    %v338 = vlaneseq
    %v339 = vshrl.u32 %v338, 7
    %v340 = vsub.s32 %v337, %v339
    %v341 = vrot.slane %v319, %v340
    %v343 = vunpack.c.l.s4 1966171168
    %v344 = vunpack.c.0.s8 %v343
    %v345 = vlaneseq
    %v346 = vshrl.u32 %v345, 7
    %v347 = vsub.s32 %v344, %v346
    %v348 = vrot.slane %v320, %v347
    %v349 = vcombine.low %v327, %v334
    %v350 = vcombine.low %v341, %v348
    %v352 = vunpack.c.l.s4 1966171168
    %v353 = vunpack.c.0.s8 %v352
    %v354 = vlaneseq
    %v355 = vshrl.u32 %v354, 7
    %v356 = vsub.s32 %v353, %v355
    %v357 = vrot.slane %v349, %v356
    %v359 = vunpack.c.l.s4 1966171168
    %v360 = vunpack.c.0.s8 %v359
    %v361 = vlaneseq
    %v362 = vshrl.u32 %v361, 7
    %v363 = vsub.s32 %v360, %v362
    %v364 = vrot.slane %v350, %v363
    %v365 = vcombine.low %v357, %v364
    %v368 = vmax.f32 %v21, %v316
    %v369 = vmax.f32 %v22, %v365
    %v386 = vcombine.low %v204, %v203
    %v387 = vcombine.low %v202, %v201
    %v388 = vcombine.low %v200, %v199
    %v389 = vcombine.low %v198, %v197
    %v391 = vunpack.c.l.s4 1966171168
    %v392 = vunpack.c.0.s8 %v391
    %v393 = vlaneseq
    %v394 = vshrl.u32 %v393, 7
    %v395 = vsub.s32 %v392, %v394
    %v396 = vrot.slane %v386, %v395
    %v398 = vunpack.c.l.s4 1966171168
    %v399 = vunpack.c.0.s8 %v398
    %v400 = vlaneseq
    %v401 = vshrl.u32 %v400, 7
    %v402 = vsub.s32 %v399, %v401
    %v403 = vrot.slane %v387, %v402
    %v405 = vunpack.c.l.s4 1966171168
    %v406 = vunpack.c.0.s8 %v405
    %v407 = vlaneseq
    %v408 = vshrl.u32 %v407, 7
    %v409 = vsub.s32 %v406, %v408
    %v410 = vrot.slane %v388, %v409
    %v412 = vunpack.c.l.s4 1966171168
    %v413 = vunpack.c.0.s8 %v412
    %v414 = vlaneseq
    %v415 = vshrl.u32 %v414, 7
    %v416 = vsub.s32 %v413, %v415
    %v417 = vrot.slane %v389, %v416
    %v418 = vcombine.low %v396, %v403
    %v419 = vcombine.low %v410, %v417
    %v421 = vunpack.c.l.s4 1966171168
    %v422 = vunpack.c.0.s8 %v421
    %v423 = vlaneseq
    %v424 = vshrl.u32 %v423, 7
    %v425 = vsub.s32 %v422, %v424
    %v426 = vrot.slane %v418, %v425
    %v428 = vunpack.c.l.s4 1966171168
    %v429 = vunpack.c.0.s8 %v428
    %v430 = vlaneseq
    %v431 = vshrl.u32 %v430, 7
    %v432 = vsub.s32 %v429, %v431
    %v433 = vrot.slane %v419, %v432
    %v434 = vcombine.low %v426, %v433
    %v435 = vcombine.low %v196, %v195
    %v436 = vcombine.low %v194, %v193
    %v437 = vcombine.low %v192, %v191
    %v438 = vcombine.low %v190, %v189
    %v440 = vunpack.c.l.s4 1966171168
    %v441 = vunpack.c.0.s8 %v440
    %v442 = vlaneseq
    %v443 = vshrl.u32 %v442, 7
    %v444 = vsub.s32 %v441, %v443
    %v445 = vrot.slane %v435, %v444
    %v447 = vunpack.c.l.s4 1966171168
    %v448 = vunpack.c.0.s8 %v447
    %v449 = vlaneseq
    %v450 = vshrl.u32 %v449, 7
    %v451 = vsub.s32 %v448, %v450
    %v452 = vrot.slane %v436, %v451
    %v454 = vunpack.c.l.s4 1966171168
    %v455 = vunpack.c.0.s8 %v454
    %v456 = vlaneseq
    %v457 = vshrl.u32 %v456, 7
    %v458 = vsub.s32 %v455, %v457
    %v459 = vrot.slane %v437, %v458
    %v461 = vunpack.c.l.s4 1966171168
    %v462 = vunpack.c.0.s8 %v461
    %v463 = vlaneseq
    %v464 = vshrl.u32 %v463, 7
    %v465 = vsub.s32 %v462, %v464
    %v466 = vrot.slane %v438, %v465
    %v467 = vcombine.low %v445, %v452
    %v468 = vcombine.low %v459, %v466
    %v470 = vunpack.c.l.s4 1966171168
    %v471 = vunpack.c.0.s8 %v470
    %v472 = vlaneseq
    %v473 = vshrl.u32 %v472, 7
    %v474 = vsub.s32 %v471, %v473
    %v475 = vrot.slane %v467, %v474
    %v477 = vunpack.c.l.s4 1966171168
    %v478 = vunpack.c.0.s8 %v477
    %v479 = vlaneseq
    %v480 = vshrl.u32 %v479, 7
    %v481 = vsub.s32 %v478, %v480
    %v482 = vrot.slane %v468, %v481
    %v483 = vcombine.low %v475, %v482
    %v486 = vmin.f32 %v21, %v434
    %v487 = vmin.f32 %v22, %v483
    %v490 = vlaneseq
    %v491 = vshrl.u32 %v490, 7
    %v492 = vsub.s32 0, %v491
    %v493 = vrot.slane %v368, %v492
    %v494 = vlaneseq
    %v495 = vshrl.u32 %v494, 7
    %v496 = vsub.s32 1, %v495
    %v497 = vrot.slane %v368, %v496
    %v498 = vlaneseq
    %v499 = vshrl.u32 %v498, 7
    %v500 = vsub.s32 2, %v499
    %v501 = vrot.slane %v368, %v500
    %v502 = vlaneseq
    %v503 = vshrl.u32 %v502, 7
    %v504 = vsub.s32 3, %v503
    %v505 = vrot.slane %v368, %v504
    %v506 = vlaneseq
    %v507 = vshrl.u32 %v506, 7
    %v508 = vsub.s32 4, %v507
    %v509 = vrot.slane %v368, %v508
    %v510 = vlaneseq
    %v511 = vshrl.u32 %v510, 7
    %v512 = vsub.s32 5, %v511
    %v513 = vrot.slane %v368, %v512
    %v514 = vlaneseq
    %v515 = vshrl.u32 %v514, 7
    %v516 = vsub.s32 6, %v515
    %v517 = vrot.slane %v368, %v516
    %v518 = vlaneseq
    %v519 = vshrl.u32 %v518, 7
    %v520 = vsub.s32 7, %v519
    %v521 = vrot.slane %v368, %v520
    %v522 = vlaneseq
    %v523 = vshrl.u32 %v522, 7
    %v524 = vsub.s32 0, %v523
    %v525 = vrot.slane %v369, %v524
    %v526 = vlaneseq
    %v527 = vshrl.u32 %v526, 7
    %v528 = vsub.s32 1, %v527
    %v529 = vrot.slane %v369, %v528
    %v530 = vlaneseq
    %v531 = vshrl.u32 %v530, 7
    %v532 = vsub.s32 2, %v531
    %v533 = vrot.slane %v369, %v532
    %v534 = vlaneseq
    %v535 = vshrl.u32 %v534, 7
    %v536 = vsub.s32 3, %v535
    %v537 = vrot.slane %v369, %v536
    %v538 = vlaneseq
    %v539 = vshrl.u32 %v538, 7
    %v540 = vsub.s32 4, %v539
    %v541 = vrot.slane %v369, %v540
    %v542 = vlaneseq
    %v543 = vshrl.u32 %v542, 7
    %v544 = vsub.s32 5, %v543
    %v545 = vrot.slane %v369, %v544
    %v546 = vlaneseq
    %v547 = vshrl.u32 %v546, 7
    %v548 = vsub.s32 6, %v547
    %v549 = vrot.slane %v369, %v548
    %v550 = vlaneseq
    %v551 = vshrl.u32 %v550, 7
    %v552 = vsub.s32 7, %v551
    %v553 = vrot.slane %v369, %v552
    %v572 = vlaneseq
    %v573 = vshrl.u32 %v572, 7
    %v574 = vsub.s32 0, %v573
    %v575 = vrot.slane %v486, %v574
    %v576 = vlaneseq
    %v577 = vshrl.u32 %v576, 7
    %v578 = vsub.s32 1, %v577
    %v579 = vrot.slane %v486, %v578
    %v580 = vlaneseq
    %v581 = vshrl.u32 %v580, 7
    %v582 = vsub.s32 2, %v581
    %v583 = vrot.slane %v486, %v582
    %v584 = vlaneseq
    %v585 = vshrl.u32 %v584, 7
    %v586 = vsub.s32 3, %v585
    %v587 = vrot.slane %v486, %v586
    %v588 = vlaneseq
    %v589 = vshrl.u32 %v588, 7
    %v590 = vsub.s32 4, %v589
    %v591 = vrot.slane %v486, %v590
    %v592 = vlaneseq
    %v593 = vshrl.u32 %v592, 7
    %v594 = vsub.s32 5, %v593
    %v595 = vrot.slane %v486, %v594
    %v596 = vlaneseq
    %v597 = vshrl.u32 %v596, 7
    %v598 = vsub.s32 6, %v597
    %v599 = vrot.slane %v486, %v598
    %v600 = vlaneseq
    %v601 = vshrl.u32 %v600, 7
    %v602 = vsub.s32 7, %v601
    %v603 = vrot.slane %v486, %v602
    %v604 = vlaneseq
    %v605 = vshrl.u32 %v604, 7
    %v606 = vsub.s32 0, %v605
    %v607 = vrot.slane %v487, %v606
    %v608 = vlaneseq
    %v609 = vshrl.u32 %v608, 7
    %v610 = vsub.s32 1, %v609
    %v611 = vrot.slane %v487, %v610
    %v612 = vlaneseq
    %v613 = vshrl.u32 %v612, 7
    %v614 = vsub.s32 2, %v613
    %v615 = vrot.slane %v487, %v614
    %v616 = vlaneseq
    %v617 = vshrl.u32 %v616, 7
    %v618 = vsub.s32 3, %v617
    %v619 = vrot.slane %v487, %v618
    %v620 = vlaneseq
    %v621 = vshrl.u32 %v620, 7
    %v622 = vsub.s32 4, %v621
    %v623 = vrot.slane %v487, %v622
    %v624 = vlaneseq
    %v625 = vshrl.u32 %v624, 7
    %v626 = vsub.s32 5, %v625
    %v627 = vrot.slane %v487, %v626
    %v628 = vlaneseq
    %v629 = vshrl.u32 %v628, 7
    %v630 = vsub.s32 6, %v629
    %v631 = vrot.slane %v487, %v630
    %v632 = vlaneseq
    %v633 = vshrl.u32 %v632, 7
    %v634 = vsub.s32 7, %v633
    %v635 = vrot.slane %v487, %v634
    %v652 = vsel %vm236, %v493, %v575
    %v653 = vsel %vm237, %v497, %v579
    %v654 = vsel %vm238, %v501, %v583
    %v655 = vsel %vm239, %v505, %v587
    %v656 = vsel %vm240, %v509, %v591
    %v657 = vsel %vm241, %v513, %v595
    %v658 = vsel %vm242, %v517, %v599
    %v659 = vsel %vm243, %v521, %v603
    %v660 = vsel %vm244, %v525, %v607
    %v661 = vsel %vm245, %v529, %v611
    %v662 = vsel %vm246, %v533, %v615
    %v663 = vsel %vm247, %v537, %v619
    %v664 = vsel %vm248, %v541, %v623
    %v665 = vsel %vm249, %v545, %v627
    %v666 = vsel %vm250, %v549, %v631
    %v667 = vsel %vm251, %v553, %v635
    %v684 = vcombine.low %v652, %v653
    %v685 = vcombine.low %v654, %v655
    %v686 = vcombine.low %v656, %v657
    %v687 = vcombine.low %v658, %v659
    %v689 = vunpack.c.l.s4 1966171168
    %v690 = vunpack.c.0.s8 %v689
    %v691 = vlaneseq
    %v692 = vshrl.u32 %v691, 7
    %v693 = vsub.s32 %v690, %v692
    %v694 = vrot.slane %v684, %v693
    %v696 = vunpack.c.l.s4 1966171168
    %v697 = vunpack.c.0.s8 %v696
    %v698 = vlaneseq
    %v699 = vshrl.u32 %v698, 7
    %v700 = vsub.s32 %v697, %v699
    %v701 = vrot.slane %v685, %v700
    %v703 = vunpack.c.l.s4 1966171168
    %v704 = vunpack.c.0.s8 %v703
    %v705 = vlaneseq
    %v706 = vshrl.u32 %v705, 7
    %v707 = vsub.s32 %v704, %v706
    %v708 = vrot.slane %v686, %v707
    %v710 = vunpack.c.l.s4 1966171168
    %v711 = vunpack.c.0.s8 %v710
    %v712 = vlaneseq
    %v713 = vshrl.u32 %v712, 7
    %v714 = vsub.s32 %v711, %v713
    %v715 = vrot.slane %v687, %v714
    %v716 = vcombine.low %v694, %v701
    %v717 = vcombine.low %v708, %v715
    %v719 = vunpack.c.l.s4 1966171168
    %v720 = vunpack.c.0.s8 %v719
    %v721 = vlaneseq
    %v722 = vshrl.u32 %v721, 7
    %v723 = vsub.s32 %v720, %v722
    %v724 = vrot.slane %v716, %v723
    %v726 = vunpack.c.l.s4 1966171168
    %v727 = vunpack.c.0.s8 %v726
    %v728 = vlaneseq
    %v729 = vshrl.u32 %v728, 7
    %v730 = vsub.s32 %v727, %v729
    %v731 = vrot.slane %v717, %v730
    %v732 = vcombine.low %v724, %v731
    %v733 = vcombine.low %v660, %v661
    %v734 = vcombine.low %v662, %v663
    %v735 = vcombine.low %v664, %v665
    %v736 = vcombine.low %v666, %v667
    %v738 = vunpack.c.l.s4 1966171168
    %v739 = vunpack.c.0.s8 %v738
    %v740 = vlaneseq
    %v741 = vshrl.u32 %v740, 7
    %v742 = vsub.s32 %v739, %v741
    %v743 = vrot.slane %v733, %v742
    %v745 = vunpack.c.l.s4 1966171168
    %v746 = vunpack.c.0.s8 %v745
    %v747 = vlaneseq
    %v748 = vshrl.u32 %v747, 7
    %v749 = vsub.s32 %v746, %v748
    %v750 = vrot.slane %v734, %v749
    %v752 = vunpack.c.l.s4 1966171168
    %v753 = vunpack.c.0.s8 %v752
    %v754 = vlaneseq
    %v755 = vshrl.u32 %v754, 7
    %v756 = vsub.s32 %v753, %v755
    %v757 = vrot.slane %v735, %v756
    %v759 = vunpack.c.l.s4 1966171168
    %v760 = vunpack.c.0.s8 %v759
    %v761 = vlaneseq
    %v762 = vshrl.u32 %v761, 7
    %v763 = vsub.s32 %v760, %v762
    %v764 = vrot.slane %v736, %v763
    %v765 = vcombine.low %v743, %v750
    %v766 = vcombine.low %v757, %v764
    %v768 = vunpack.c.l.s4 1966171168
    %v769 = vunpack.c.0.s8 %v768
    %v770 = vlaneseq
    %v771 = vshrl.u32 %v770, 7
    %v772 = vsub.s32 %v769, %v771
    %v773 = vrot.slane %v765, %v772
    %v775 = vunpack.c.l.s4 1966171168
    %v776 = vunpack.c.0.s8 %v775
    %v777 = vlaneseq
    %v778 = vshrl.u32 %v777, 7
    %v779 = vsub.s32 %v776, %v778
    %v780 = vrot.slane %v766, %v779
    %v781 = vcombine.low %v773, %v780
    %784 = vst [vmem:[#allocation5] sm:$0xff] %v732
    %785 = vst [vmem:[#allocation5 + $0x8] sm:$0xff] %v781
    // Predicated region
    $region10: #{tpu_custom_call.1} parent=1 // pred_check
      _
    $region11: #{tpu_custom_call.1} parent=1 // pred_check_branch
      %787 = sbr.rel (0) target = $region13
    $region12: #{tpu_custom_call.1} parent=1 // pred_region
      %s789 = ssub.s32 256, 256
      %790 = vsyncadd [#allocation4], %s789
      %s792 = sshll.u32 [#allocation5], 4
      %s793 = int_to_ptr.vmem [resolvable:$true] %s792
      %795 = dma.vmem_to_hbm [thread:$0]  %s793, 256, %s1, [#allocation4]
    $region13: #{tpu_custom_call.1} parent=1 // pred_fallthru
      _
    // Predicated region
    $region14: #{tpu_custom_call.1} parent=1 // pred_check
      _
    $region15: #{tpu_custom_call.1} parent=1 // pred_check_branch
      %797 = sbr.rel (0) target = $region17
    $region16: #{tpu_custom_call.1} parent=1 // pred_region
      %798 = dma.done [#allocation4], 256
    $region17: #{tpu_custom_call.1} parent=1 // pred_fallthru
      _
    %799 = vsyncpa [#allocation3], 1
    %800 = vsyncpa [#allocation4], 1

</llo_original>
